<compile_context>
chip_gen: v6e
topology: v6e:2x2x1
jax: 0.10.0
libtpu: 0.0.40
codegen_flags: <defaults>
</compile_context>

<pallas_src>
import jax
import jax.numpy as jnp
from jax.experimental import pallas as pl
from jax.experimental.pallas import tpu as pltpu


def _slab_layout(L, O, H):
    """Static row/column offsets of the single packed f32 weight slab."""
    width = max(4 * H, L + H, H + O)
    r_lstm = 0                      # rows [r_lstm, r_lstm+2H): (2H,4H) [W_ih^T ; W_hh^T], cols i|f|g|o
    r_big = r_lstm + 2 * H          # rows [r_big, r_big+O+H): (O+H, L+H) [[wax, wcx],[wah, 0]]
    r_sq = r_big + O + H            # rows [r_sq, r_sq+H): cols [0:H)=wca, cols [H:H+O)=w_out
    r_bg = r_sq + H                 # 1 row: fused gate bias (b_ih + b_hh), gate-major, width 4H
    r_bs = r_bg + 1                 # 1 row: [b_attn(L) | b_comb(H) | b_out(O)]
    rows = r_bs + 1
    return dict(width=width, r_lstm=r_lstm, r_big=r_big, r_sq=r_sq,
                r_bg=r_bg, r_bs=r_bs, rows=rows)


def pack_params(params):
    """Pack the raw (PyTorch-layout) parameters into ONE kernel-side f32 slab. Runs once."""
    H = params["wca"].shape[0]
    O = params["wcx"].shape[0]
    L = params["wax"].shape[1]
    lay = _slab_layout(L, O, H)

    # (4,H,H) per-gate (in,out) weights -> (H,4H) gate-major i|f|g|o, stacked [ih; hh] -> (2H,4H)
    w_ih = jnp.transpose(params["wih"], (1, 0, 2)).reshape(H, 4 * H)
    w_hh = jnp.transpose(params["whh"], (1, 0, 2)).reshape(H, 4 * H)
    w_lstm = jnp.concatenate([w_ih, w_hh], axis=0)

    # W_big: [x | h2] @ W_big = [attn logits (pre-bias) | comb_x]
    w_big = jnp.concatenate([
        jnp.concatenate([params["wax"], params["wcx"]], axis=1),                      # (O, L+H)
        jnp.concatenate([params["wah"], jnp.zeros((H, H), jnp.float32)], axis=1),     # (H, L+H)
    ], axis=0)

    slab = jnp.zeros((lay["rows"], lay["width"]), jnp.float32)
    slab = slab.at[lay["r_lstm"]:lay["r_lstm"] + 2 * H, 0:4 * H].set(w_lstm)
    slab = slab.at[lay["r_big"]:lay["r_big"] + O + H, 0:L + H].set(w_big)
    slab = slab.at[lay["r_sq"]:lay["r_sq"] + H, 0:H].set(params["wca"])
    slab = slab.at[lay["r_sq"]:lay["r_sq"] + H, H:H + O].set(params["wout"])
    slab = slab.at[lay["r_bg"], 0:4 * H].set(
        jnp.reshape(params["bih"] + params["bhh"], (4 * H,)))
    slab = slab.at[lay["r_bs"], 0:L].set(params["ba"][0])
    slab = slab.at[lay["r_bs"], L:L + H].set(params["bc"][0])
    slab = slab.at[lay["r_bs"], L + H:L + H + O].set(params["bout"][0])
    return {"slab": slab}


def _make_kernel(B, L, O, H, out_w):
    lay = _slab_layout(L, O, H)
    r_lstm, r_big, r_sq = lay["r_lstm"], lay["r_big"], lay["r_sq"]
    r_bg, r_bs = lay["r_bg"], lay["r_bs"]

    def kernel(act_ref, enc_ref, w_ref, out_ref):
        # packed activations: [x | h2 | h | c]
        xh2 = act_ref[:, 0:O + H]                      # (B, O+H)
        h = act_ref[:, O + H:O + 2 * H]                # (B, H)
        c = act_ref[:, O + 2 * H:O + 3 * H]            # (B, H)

        b_attn = w_ref[r_bs:r_bs + 1, 0:L]             # (1, L)
        b_comb = w_ref[r_bs:r_bs + 1, L:L + H]         # (1, H)
        b_out = w_ref[r_bs:r_bs + 1, L + H:L + H + O]  # (1, O)
        b_gates = w_ref[r_bg:r_bg + 1, 0:4 * H]        # (1, 4H)

        # ---- one MXU push: [logits | comb_x] = [x|h2] @ [[wax, wcx],[wah, 0]] ----
        lc = jnp.dot(xh2, w_ref[r_big:r_big + O + H, 0:L + H],
                     preferred_element_type=jnp.float32)        # (B, L+H)
        logits = lc[:, 0:L] + b_attn
        comb_x = lc[:, L:L + H]

        # ---- softmax over L; approximate reciprocal runs on the EUP slot ----
        m = jnp.max(logits, axis=1, keepdims=True)
        e = jnp.exp(logits - m)
        attn_w = e * pl.reciprocal(jnp.sum(e, axis=1, keepdims=True), approx=True)  # (B, L)

        # ---- attn_applied = einsum('bl,blh->bh'): statically unrolled over L ----
        applied = attn_w[:, 0:1] * enc_ref[:, 0, :]
        for l in range(1, L):
            applied = applied + attn_w[:, l:l + 1] * enc_ref[:, l, :]   # (B, H)

        # ---- attn_combine + relu ----
        comb = comb_x + jnp.dot(applied, w_ref[r_sq:r_sq + H, 0:H],
                                preferred_element_type=jnp.float32) + b_comb
        comb = jnp.maximum(comb, 0.0)                                   # (B, H)

        # ---- fused single-step LSTM: one (B,2H)@(2H,4H) push, gates i|f|g|o ----
        gates = jnp.dot(jnp.concatenate([comb, h], axis=1),
                        w_ref[r_lstm:r_lstm + 2 * H, 0:4 * H],
                        preferred_element_type=jnp.float32) + b_gates   # (B, 4H)
        sig = jax.nn.sigmoid(gates)     # full (B,4H) block: 1 EUP pass
        th = jnp.tanh(gates)            # full (B,4H) block: 1 EUP pass
        i_g = sig[:, 0:H]
        f_g = sig[:, H:2 * H]
        g_g = th[:, 2 * H:3 * H]
        o_g = sig[:, 3 * H:4 * H]
        c_new = f_g * c + i_g * g_g
        h_new = o_g * jnp.tanh(c_new)

        # ---- output layer ----
        pred = jnp.dot(h_new, w_ref[r_sq:r_sq + H, H:H + O],
                       preferred_element_type=jnp.float32) + b_out      # (B, O)

        # ---- single lane-dense (B, out_w) store ----
        pieces = [pred, h_new, c_new]
        pad = out_w - (O + 2 * H)
        if pad:
            pieces.append(jnp.zeros((B, pad), jnp.float32))
        out_ref[...] = jnp.concatenate(pieces, axis=1)

    return kernel


def attention_decoder(x, hidden, encoder_outputs, packed):
    """Mirrors AttentionDecoder.forward (num_layers=1, dropout inactive).
    hidden = (h, c), each (B, H).  Returns (pred (B,O), (h_new (1,B,H), c_new (1,B,H)))."""
    h, c = hidden
    B, H = h.shape
    O = x.shape[1]
    L = encoder_outputs.shape[1]
    out_w = max(128, -(-(O + 2 * H) // 128) * 128)

    # Faithfully reproduce PyTorch `h.reshape(h.shape[1], -1).transpose(1, 0)` (a value scramble
    # unless B == H — probable upstream model bug, kept for fidelity), then pack all per-step
    # activations into ONE kernel input so the prologue is a single activation DMA.
    h2 = jnp.transpose(jnp.reshape(h, (H, B)))
    act = jnp.concatenate([x, h2, h, c], axis=1)           # (B, O + 3H)

    vmem = pltpu.MemorySpace.VMEM
    out = pl.pallas_call(
        _make_kernel(B, L, O, H, out_w),
        out_shape=jax.ShapeDtypeStruct((B, out_w), jnp.float32),
        in_specs=[pl.BlockSpec(memory_space=vmem)] * 3,
        out_specs=pl.BlockSpec(memory_space=vmem),
    )(act, encoder_outputs, packed["slab"])

    pred = out[:, 0:O]
    h_new = out[:, O:O + H]
    c_new = out[:, O + H:O + 2 * H]
    # decoder_hidden = (h_n, c_n), each (1, B, H) as returned by nn.LSTM
    return pred, (h_new[None, ...], c_new[None, ...])


def reference(x, hidden, enc, params):
    """Pure-JAX reference of the PyTorch forward (num_layers=1, unfused weights)."""
    h, c = hidden
    B, H = h.shape
    h2 = jnp.transpose(jnp.reshape(h, (H, B)))
    logits = x @ params["wax"] + h2 @ params["wah"] + params["ba"][0]
    w = jax.nn.softmax(logits, axis=1)
    applied = jnp.einsum("bl,blh->bh", w, enc)
    comb = jax.nn.relu(x @ params["wcx"] + applied @ params["wca"] + params["bc"][0])
    gates = [
        comb @ params["wih"][k] + h @ params["whh"][k]
        + params["bih"][k, 0] + params["bhh"][k, 0]
        for k in range(4)
    ]
    i_g, f_g = jax.nn.sigmoid(gates[0]), jax.nn.sigmoid(gates[1])
    g_g, o_g = jnp.tanh(gates[2]), jax.nn.sigmoid(gates[3])
    c_new = f_g * c + i_g * g_g
    h_new = o_g * jnp.tanh(c_new)
    pred = h_new @ params["wout"] + params["bout"][0]
    return pred, (h_new[None, ...], c_new[None, ...])


if __name__ == "__main__":
    # Module hyper-params (num_layers=1, dropout inactive):
    B = 8          # batch
    L = 8          # input_len (encoder sequence length / attention span)
    O = 16         # output_size
    H = 32         # hidden_size

    key = jax.random.PRNGKey(0)
    ks = jax.random.split(key, 16)

    def init(k, shape, scale=0.1):
        return (scale * jax.random.normal(k, shape)).astype(jnp.float32)

    # Deterministic synthetic parameters (Linear weights stored as (in, out)).
    params = {
        "wax": init(ks[0], (O, L)),  "wah": init(ks[1], (H, L)),  "ba": init(ks[2], (1, L)),
        "wcx": init(ks[3], (O, H)),  "wca": init(ks[4], (H, H)),  "bc": init(ks[5], (1, H)),
        "wih": init(ks[6], (4, H, H)), "bih": init(ks[7], (4, 1, H)),
        "whh": init(ks[8], (4, H, H)), "bhh": init(ks[9], (4, 1, H)),
        "wout": init(ks[10], (H, O)), "bout": init(ks[11], (1, O)),
    }
    packed = pack_params(params)   # packed once into a single slab; reused every decode step

    # Example inputs.
    x = init(ks[12], (B, O), scale=1.0)
    h0 = init(ks[13], (B, H), scale=1.0)
    c0 = init(ks[14], (B, H), scale=1.0)
    enc = init(ks[15], (B, L, H), scale=1.0)

    decoder = jax.jit(attention_decoder)
    pred, (h_new, c_new) = decoder(x, (h0, c0), enc, packed)
    jax.block_until_ready((pred, h_new, c_new))

    # Correctness check against the pure-JAX reference of the PyTorch forward.
    # Tolerance loosened to 2e-3 because the softmax normalizer uses pl.reciprocal(approx=True).
    pred_r, (h_r, c_r) = reference(x, (h0, c0), enc, params)
    assert pred.shape == (B, O) and h_new.shape == (1, B, H) and c_new.shape == (1, B, H)
    assert jnp.allclose(pred, pred_r, atol=2e-3, rtol=2e-3)
    assert jnp.allclose(h_new, h_r, atol=2e-3, rtol=2e-3)
    assert jnp.allclose(c_new, c_r, atol=2e-3, rtol=2e-3)

    print("KERNEL_OK")
</pallas_src>

<mosaic_0001>
module attributes {stable_mosaic.version = 11 : i64} {
  func.func @kernel(%arg0: memref<8x112xf32, #tpu.memory_space<vmem>>, %arg1: memref<8x8x32xf32, #tpu.memory_space<vmem>>, %arg2: memref<146x128xf32, #tpu.memory_space<vmem>>, %arg3: memref<8x128xf32, #tpu.memory_space<vmem>>) attributes {dimension_semantics = [], scalar_prefetch = 0 : i64, scratch_operands = 0 : i64, tpu.core_type = #tpu.core_type<tc>} {
    %c0 = arith.constant 0 : index
    %c0_0 = arith.constant 0 : index
    %0 = vector.load %arg0[%c0, %c0_0] : memref<8x112xf32, #tpu.memory_space<vmem>>, vector<8x48xf32>
    %c0_1 = arith.constant 0 : index
    %c48 = arith.constant 48 : index
    %1 = vector.load %arg0[%c0_1, %c48] : memref<8x112xf32, #tpu.memory_space<vmem>>, vector<8x32xf32>
    %c0_2 = arith.constant 0 : index
    %c80 = arith.constant 80 : index
    %2 = vector.load %arg0[%c0_2, %c80] : memref<8x112xf32, #tpu.memory_space<vmem>>, vector<8x32xf32>
    %c145 = arith.constant 145 : index
    %c0_3 = arith.constant 0 : index
    %3 = vector.load %arg2[%c145, %c0_3] : memref<146x128xf32, #tpu.memory_space<vmem>>, vector<1x8xf32>
    %c145_4 = arith.constant 145 : index
    %c8 = arith.constant 8 : index
    %4 = vector.load %arg2[%c145_4, %c8] : memref<146x128xf32, #tpu.memory_space<vmem>>, vector<1x32xf32>
    %c145_5 = arith.constant 145 : index
    %c40 = arith.constant 40 : index
    %5 = vector.load %arg2[%c145_5, %c40] : memref<146x128xf32, #tpu.memory_space<vmem>>, vector<1x16xf32>
    %c144 = arith.constant 144 : index
    %c0_6 = arith.constant 0 : index
    %6 = vector.load %arg2[%c144, %c0_6] : memref<146x128xf32, #tpu.memory_space<vmem>>, vector<1x128xf32>
    %c64 = arith.constant 64 : index
    %c0_7 = arith.constant 0 : index
    %7 = vector.load %arg2[%c64, %c0_7] : memref<146x128xf32, #tpu.memory_space<vmem>>, vector<48x40xf32>
    %cst = arith.constant dense<0.000000e+00> : vector<8x40xf32>
    %8 = tpu.matmul %0, %7, %cst {dimension_numbers = #tpu.dot_dimension_numbers<[1], [0], [0], [1], [0, 0, 1, 1], [], []>} : vector<8x48xf32>, vector<48x40xf32>, vector<8x40xf32> -> vector<8x40xf32>
    %9 = vector.extract_strided_slice %8 {offsets = [0, 0], sizes = [8, 8], strides = [1, 1]} : vector<8x40xf32> to vector<8x8xf32>
    %10 = vector.broadcast %3 : vector<1x8xf32> to vector<8x8xf32>
    %11 = arith.addf %9, %10 : vector<8x8xf32>
    %12 = vector.extract_strided_slice %8 {offsets = [0, 8], sizes = [8, 32], strides = [1, 1]} : vector<8x40xf32> to vector<8x32xf32>
    %cst_8 = arith.constant dense<0xFF800000> : vector<8xf32>
    %13 = vector.multi_reduction <maximumf>, %11, %cst_8 [1] : vector<8x8xf32> to vector<8xf32>
    %14 = vector.shape_cast %13 : vector<8xf32> to vector<8x1xf32>
    %15 = vector.broadcast %14 : vector<8x1xf32> to vector<8x8xf32>
    %16 = arith.subf %11, %15 : vector<8x8xf32>
    %17 = math.exp %16 : vector<8x8xf32>
    %cst_9 = arith.constant dense<0.000000e+00> : vector<8xf32>
    %18 = vector.multi_reduction <add>, %17, %cst_9 [1] : vector<8x8xf32> to vector<8xf32>
    %19 = vector.shape_cast %18 : vector<8xf32> to vector<8x1xf32>
    %20 = tpu.reciprocal %19 {approx = true} : vector<8x1xf32> -> vector<8x1xf32>
    %21 = vector.broadcast %20 : vector<8x1xf32> to vector<8x8xf32>
    %22 = arith.mulf %17, %21 : vector<8x8xf32>
    %23 = vector.extract_strided_slice %22 {offsets = [0, 0], sizes = [8, 1], strides = [1, 1]} : vector<8x8xf32> to vector<8x1xf32>
    %c0_10 = arith.constant 0 : index
    %c0_11 = arith.constant 0 : index
    %c0_12 = arith.constant 0 : index
    %24 = vector.load %arg1[%c0_10, %c0_11, %c0_12] : memref<8x8x32xf32, #tpu.memory_space<vmem>>, vector<8x1x32xf32>
    %25 = vector.shape_cast %24 : vector<8x1x32xf32> to vector<8x32xf32>
    %26 = vector.broadcast %23 : vector<8x1xf32> to vector<8x32xf32>
    %27 = arith.mulf %26, %25 : vector<8x32xf32>
    %28 = vector.extract_strided_slice %22 {offsets = [0, 1], sizes = [8, 1], strides = [1, 1]} : vector<8x8xf32> to vector<8x1xf32>
    %c0_13 = arith.constant 0 : index
    %c1 = arith.constant 1 : index
    %c0_14 = arith.constant 0 : index
    %29 = vector.load %arg1[%c0_13, %c1, %c0_14] : memref<8x8x32xf32, #tpu.memory_space<vmem>>, vector<8x1x32xf32>
    %30 = vector.shape_cast %29 : vector<8x1x32xf32> to vector<8x32xf32>
    %31 = vector.broadcast %28 : vector<8x1xf32> to vector<8x32xf32>
    %32 = arith.mulf %31, %30 : vector<8x32xf32>
    %33 = arith.addf %27, %32 : vector<8x32xf32>
    %34 = vector.extract_strided_slice %22 {offsets = [0, 2], sizes = [8, 1], strides = [1, 1]} : vector<8x8xf32> to vector<8x1xf32>
    %c0_15 = arith.constant 0 : index
    %c2 = arith.constant 2 : index
    %c0_16 = arith.constant 0 : index
    %35 = vector.load %arg1[%c0_15, %c2, %c0_16] : memref<8x8x32xf32, #tpu.memory_space<vmem>>, vector<8x1x32xf32>
    %36 = vector.shape_cast %35 : vector<8x1x32xf32> to vector<8x32xf32>
    %37 = vector.broadcast %34 : vector<8x1xf32> to vector<8x32xf32>
    %38 = arith.mulf %37, %36 : vector<8x32xf32>
    %39 = arith.addf %33, %38 : vector<8x32xf32>
    %40 = vector.extract_strided_slice %22 {offsets = [0, 3], sizes = [8, 1], strides = [1, 1]} : vector<8x8xf32> to vector<8x1xf32>
    %c0_17 = arith.constant 0 : index
    %c3 = arith.constant 3 : index
    %c0_18 = arith.constant 0 : index
    %41 = vector.load %arg1[%c0_17, %c3, %c0_18] : memref<8x8x32xf32, #tpu.memory_space<vmem>>, vector<8x1x32xf32>
    %42 = vector.shape_cast %41 : vector<8x1x32xf32> to vector<8x32xf32>
    %43 = vector.broadcast %40 : vector<8x1xf32> to vector<8x32xf32>
    %44 = arith.mulf %43, %42 : vector<8x32xf32>
    %45 = arith.addf %39, %44 : vector<8x32xf32>
    %46 = vector.extract_strided_slice %22 {offsets = [0, 4], sizes = [8, 1], strides = [1, 1]} : vector<8x8xf32> to vector<8x1xf32>
    %c0_19 = arith.constant 0 : index
    %c4 = arith.constant 4 : index
    %c0_20 = arith.constant 0 : index
    %47 = vector.load %arg1[%c0_19, %c4, %c0_20] : memref<8x8x32xf32, #tpu.memory_space<vmem>>, vector<8x1x32xf32>
    %48 = vector.shape_cast %47 : vector<8x1x32xf32> to vector<8x32xf32>
    %49 = vector.broadcast %46 : vector<8x1xf32> to vector<8x32xf32>
    %50 = arith.mulf %49, %48 : vector<8x32xf32>
    %51 = arith.addf %45, %50 : vector<8x32xf32>
    %52 = vector.extract_strided_slice %22 {offsets = [0, 5], sizes = [8, 1], strides = [1, 1]} : vector<8x8xf32> to vector<8x1xf32>
    %c0_21 = arith.constant 0 : index
    %c5 = arith.constant 5 : index
    %c0_22 = arith.constant 0 : index
    %53 = vector.load %arg1[%c0_21, %c5, %c0_22] : memref<8x8x32xf32, #tpu.memory_space<vmem>>, vector<8x1x32xf32>
    %54 = vector.shape_cast %53 : vector<8x1x32xf32> to vector<8x32xf32>
    %55 = vector.broadcast %52 : vector<8x1xf32> to vector<8x32xf32>
    %56 = arith.mulf %55, %54 : vector<8x32xf32>
    %57 = arith.addf %51, %56 : vector<8x32xf32>
    %58 = vector.extract_strided_slice %22 {offsets = [0, 6], sizes = [8, 1], strides = [1, 1]} : vector<8x8xf32> to vector<8x1xf32>
    %c0_23 = arith.constant 0 : index
    %c6 = arith.constant 6 : index
    %c0_24 = arith.constant 0 : index
    %59 = vector.load %arg1[%c0_23, %c6, %c0_24] : memref<8x8x32xf32, #tpu.memory_space<vmem>>, vector<8x1x32xf32>
    %60 = vector.shape_cast %59 : vector<8x1x32xf32> to vector<8x32xf32>
    %61 = vector.broadcast %58 : vector<8x1xf32> to vector<8x32xf32>
    %62 = arith.mulf %61, %60 : vector<8x32xf32>
    %63 = arith.addf %57, %62 : vector<8x32xf32>
    %64 = vector.extract_strided_slice %22 {offsets = [0, 7], sizes = [8, 1], strides = [1, 1]} : vector<8x8xf32> to vector<8x1xf32>
    %c0_25 = arith.constant 0 : index
    %c7 = arith.constant 7 : index
    %c0_26 = arith.constant 0 : index
    %65 = vector.load %arg1[%c0_25, %c7, %c0_26] : memref<8x8x32xf32, #tpu.memory_space<vmem>>, vector<8x1x32xf32>
    %66 = vector.shape_cast %65 : vector<8x1x32xf32> to vector<8x32xf32>
    %67 = vector.broadcast %64 : vector<8x1xf32> to vector<8x32xf32>
    %68 = arith.mulf %67, %66 : vector<8x32xf32>
    %69 = arith.addf %63, %68 : vector<8x32xf32>
    %c112 = arith.constant 112 : index
    %c0_27 = arith.constant 0 : index
    %70 = vector.load %arg2[%c112, %c0_27] : memref<146x128xf32, #tpu.memory_space<vmem>>, vector<32x32xf32>
    %cst_28 = arith.constant dense<0.000000e+00> : vector<8x32xf32>
    %71 = tpu.matmul %69, %70, %cst_28 {dimension_numbers = #tpu.dot_dimension_numbers<[1], [0], [0], [1], [0, 0, 1, 1], [], []>} : vector<8x32xf32>, vector<32x32xf32>, vector<8x32xf32> -> vector<8x32xf32>
    %72 = arith.addf %12, %71 : vector<8x32xf32>
    %73 = vector.broadcast %4 : vector<1x32xf32> to vector<8x32xf32>
    %74 = arith.addf %72, %73 : vector<8x32xf32>
    %cst_29 = arith.constant 0.000000e+00 : f32
    %75 = vector.broadcast %cst_29 : f32 to vector<8x32xf32>
    %76 = arith.maximumf %74, %75 : vector<8x32xf32>
    %77 = tpu.concatenate %76, %1 in 1 : vector<8x32xf32>, vector<8x32xf32> -> vector<8x64xf32>
    %c0_30 = arith.constant 0 : index
    %c0_31 = arith.constant 0 : index
    %78 = vector.load %arg2[%c0_30, %c0_31] : memref<146x128xf32, #tpu.memory_space<vmem>>, vector<64x128xf32>
    %cst_32 = arith.constant dense<0.000000e+00> : vector<8x128xf32>
    %79 = tpu.matmul %77, %78, %cst_32 {dimension_numbers = #tpu.dot_dimension_numbers<[1], [0], [0], [1], [0, 0, 1, 1], [], []>} : vector<8x64xf32>, vector<64x128xf32>, vector<8x128xf32> -> vector<8x128xf32>
    %80 = vector.broadcast %6 : vector<1x128xf32> to vector<8x128xf32>
    %81 = arith.addf %79, %80 : vector<8x128xf32>
    %82 = arith.negf %81 : vector<8x128xf32>
    %83 = math.exp %82 : vector<8x128xf32>
    %cst_33 = arith.constant 1.000000e+00 : f32
    %84 = vector.broadcast %cst_33 : f32 to vector<8x128xf32>
    %85 = arith.addf %84, %83 : vector<8x128xf32>
    %86 = arith.divf %84, %85 : vector<8x128xf32>
    %87 = math.tanh %81 : vector<8x128xf32>
    %88 = vector.extract_strided_slice %86 {offsets = [0, 0], sizes = [8, 32], strides = [1, 1]} : vector<8x128xf32> to vector<8x32xf32>
    %89 = vector.extract_strided_slice %86 {offsets = [0, 32], sizes = [8, 32], strides = [1, 1]} : vector<8x128xf32> to vector<8x32xf32>
    %90 = vector.extract_strided_slice %87 {offsets = [0, 64], sizes = [8, 32], strides = [1, 1]} : vector<8x128xf32> to vector<8x32xf32>
    %91 = vector.extract_strided_slice %86 {offsets = [0, 96], sizes = [8, 32], strides = [1, 1]} : vector<8x128xf32> to vector<8x32xf32>
    %92 = arith.mulf %89, %2 : vector<8x32xf32>
    %93 = arith.mulf %88, %90 : vector<8x32xf32>
    %94 = arith.addf %92, %93 : vector<8x32xf32>
    %95 = math.tanh %94 : vector<8x32xf32>
    %96 = arith.mulf %91, %95 : vector<8x32xf32>
    %c112_34 = arith.constant 112 : index
    %c32 = arith.constant 32 : index
    %97 = vector.load %arg2[%c112_34, %c32] : memref<146x128xf32, #tpu.memory_space<vmem>>, vector<32x16xf32>
    %cst_35 = arith.constant dense<0.000000e+00> : vector<8x16xf32>
    %98 = tpu.matmul %96, %97, %cst_35 {dimension_numbers = #tpu.dot_dimension_numbers<[1], [0], [0], [1], [0, 0, 1, 1], [], []>} : vector<8x32xf32>, vector<32x16xf32>, vector<8x16xf32> -> vector<8x16xf32>
    %99 = vector.broadcast %5 : vector<1x16xf32> to vector<8x16xf32>
    %100 = arith.addf %98, %99 : vector<8x16xf32>
    %cst_36 = arith.constant 0.000000e+00 : f32
    %101 = vector.broadcast %cst_36 : f32 to vector<8x48xf32>
    %102 = tpu.concatenate %100, %96, %94, %101 in 1 : vector<8x16xf32>, vector<8x32xf32>, vector<8x32xf32>, vector<8x48xf32> -> vector<8x128xf32>
    %c0_37 = arith.constant 0 : index
    %c0_38 = arith.constant 0 : index
    %103 = vector.load %arg3[%c0_37, %c0_38] : memref<8x128xf32, #tpu.memory_space<vmem>>, vector<8x128xf32>
    tpu.vector_store %arg3[%c0_37, %c0_38], %102 {strides = array<i32>} : memref<8x128xf32, #tpu.memory_space<vmem>>, vector<8x128xf32>,
    return
  }
}

</mosaic_0001>

<llo_original>
// kernel: attention_decoder.1
$region0: #{attention_decoder.1}
  #allocation0 [shape = 'u32[]', space=smem, size = 0x4, offset = 0x4, fixed_abs, tag = 'smem constant byte address 0x4 - core index']
  #allocation1 [shape = 'u32[144,128]{1,0:T(1,128)}', space=vmem, size = 0x12000, scoped, tag = 'internal scratch']
  %s0 = inlined_call_operand.vmem [shape: f32[8,112], index: 0, kind: input, shape index: {}]
  %s1 = inlined_call_operand.vmem [shape: f32[8,8,32], index: 1, kind: input, shape index: {}]
  %s2 = inlined_call_operand.hbm [shape: f32[146,128], index: 2, kind: input, shape index: {}]
  %s3 = inlined_call_operand.vmem [shape: f32[8,128], index: 3, kind: output, shape index: {}]
  %s4 = sld [smem:[#allocation0]]
  $region26: #{attention_decoder.1} parent=0
    _
  %s6 = ssub.s32 1, %s4
  %s7 = scalar_select 0, %s6, %s4
  $region1: #{attention_decoder.1} parent=0
    #allocation2 [shape = 'u8[77824]{0}', space=vmem, size = 0x13000, scoped, tag = 'input window, operand 2, single buffered']
    #allocation3 [shape = 's32[1]{0}', space=sflag, size = 0x4, scoped, tag = 'scoped memory for attention_decoder.1']
    %8 = vsyncpa [#allocation3], 0
    // Predicated region
    $region2: #{attention_decoder.1} parent=1 // pred_check
      _
    $region3: #{attention_decoder.1} parent=1 // pred_check_branch
      %10 = sbr.rel (0) target = $region5
    $region4: #{attention_decoder.1} parent=1 // pred_region
      _
    $region5: #{attention_decoder.1} parent=1 // pred_fallthru
      _
    // Predicated region
    $region6: #{attention_decoder.1} parent=1 // pred_check
      _
    $region7: #{attention_decoder.1} parent=1 // pred_check_branch
      %12 = sbr.rel (0) target = $region9
    $region8: #{attention_decoder.1} parent=1 // pred_region
      _
    $region9: #{attention_decoder.1} parent=1 // pred_fallthru
      _
    // Predicated region
    $region10: #{attention_decoder.1} parent=1 // pred_check
      _
    $region11: #{attention_decoder.1} parent=1 // pred_check_branch
      %14 = sbr.rel (0) target = $region13
    $region12: #{attention_decoder.1} parent=1 // pred_region
      %s16 = ssub.s32 2432, 2432
      %17 = vsyncadd [#allocation3], %s16
      %s18 = sshll.u32 [#allocation2], 4
      %s19 = int_to_ptr.vmem [resolvable:$true] %s18
      %24 = dma.hbm_to_vmem [thread:$0]  %s2, 2432, %s19, [#allocation3], 128, 128, 8
    $region13: #{attention_decoder.1} parent=1 // pred_fallthru
      _
    // Predicated region
    $region14: #{attention_decoder.1} parent=1 // pred_check
      _
    $region15: #{attention_decoder.1} parent=1 // pred_check_branch
      %26 = sbr.rel (0) target = $region17
    $region16: #{attention_decoder.1} parent=1 // pred_region
      %27 = dma.done [#allocation3], 2432
    $region17: #{attention_decoder.1} parent=1 // pred_fallthru
      _
    %v28 = vld [vmem:[%s0] sm:$0xff]
    %v29 = vld [vmem:[#allocation2 + $0x91] sm:$0x1]
    %v30 = vld [vmem:[#allocation2 + $0x90] sm:$0x1]
    %v31 = vld [vmem:[#allocation2 + $0x40] sm:$0xff]
    %v32 = vld [vmem:[#allocation2 + $0x48] sm:$0xff]
    %v33 = vld [vmem:[#allocation2 + $0x50] sm:$0xff]
    %v34 = vld [vmem:[#allocation2 + $0x58] sm:$0xff]
    %v35 = vld [vmem:[#allocation2 + $0x60] sm:$0xff]
    %v36 = vld [vmem:[#allocation2 + $0x68] sm:$0xff]
    %vm37 = vcmask 392192
    %v39 = vsel %vm37, %v28, 0
    %41 = vmatprep.subr.mxu0 0.0
    %42 = vmatpush1.msra.mxu0 0.0
    %43 = vmatprep.subr.mxu0 0.0
    %44 = vmatpush1.msra.mxu0 0.0
    %45 = vmatprep.subr.mxu0 0.0
    %46 = vmatpush1.msra.mxu0 0.0
    %47 = vmatprep.subr.mxu0 0.0
    %48 = vmatpush1.msra.mxu0 0.0
    %49 = vmatprep.subr.mxu0 0.0
    %50 = vmatpush1.msra.mxu0 0.0
    %51 = vmatprep.subr.mxu0 0.0
    %52 = vmatpush1.msra.mxu0 0.0
    %53 = vmatprep.subr.mxu0 0.0
    %54 = vmatpush1.msra.mxu0 0.0
    %55 = vmatprep.subr.mxu0 0.0
    %56 = vmatpush1.msra.mxu0 0.0
    %57 = vmatprep.subr.mxu0 0.0
    %58 = vmatpush1.msra.mxu0 0.0
    %59 = vmatprep.subr.mxu0 0.0
    %60 = vmatpush1.msra.mxu0 0.0
    %61 = vmatprep.subr.mxu0 0.0
    %62 = vmatpush1.msra.mxu0 %v36
    %63 = vmatprep.subr.mxu0 0.0
    %64 = vmatpush1.msra.mxu0 %v35
    %65 = vmatprep.subr.mxu0 0.0
    %66 = vmatpush1.msra.mxu0 %v34
    %67 = vmatprep.subr.mxu0 0.0
    %68 = vmatpush1.msra.mxu0 %v33
    %69 = vmatprep.subr.mxu0 0.0
    %70 = vmatpush1.msra.mxu0 %v32
    %71 = vmatprep.subr.mxu0 0.0
    %72 = vmatpush1.msra.mxu0 %v31
    %73 = vmatprep.subr.mxu0 0.0
    %74 = vmatpush2.msra.mxu0 0.0
    %75 = vmatprep.subr.mxu0 0.0
    %76 = vmatpush2.msra.mxu0 0.0
    %77 = vmatprep.subr.mxu0 0.0
    %78 = vmatpush2.msra.mxu0 0.0
    %79 = vmatprep.subr.mxu0 0.0
    %80 = vmatpush2.msra.mxu0 0.0
    %81 = vmatprep.subr.mxu0 0.0
    %82 = vmatpush2.msra.mxu0 0.0
    %83 = vmatprep.subr.mxu0 0.0
    %84 = vmatpush2.msra.mxu0 0.0
    %85 = vmatprep.subr.mxu0 0.0
    %86 = vmatpush2.msra.mxu0 0.0
    %87 = vmatprep.subr.mxu0 0.0
    %88 = vmatpush2.msra.mxu0 0.0
    %89 = vmatprep.subr.mxu0 0.0
    %90 = vmatpush2.msra.mxu0 0.0
    %91 = vmatprep.subr.mxu0 0.0
    %92 = vmatpush2.msra.mxu0 0.0
    %93 = vmatprep.subr.mxu0 0.0
    %94 = vmatpush2.msra.mxu0 0.0
    %95 = vmatprep.subr.mxu0 0.0
    %96 = vmatpush2.msra.mxu0 0.0
    %97 = vmatprep.subr.mxu0 0.0
    %98 = vmatpush2.msra.mxu0 0.0
    %99 = vmatprep.subr.mxu0 0.0
    %100 = vmatpush2.msra.mxu0 0.0
    %101 = vmatprep.subr.mxu0 0.0
    %102 = vmatpush2.msra.mxu0 0.0
    %103 = vmatprep.subr.mxu0 0.0
    %104 = vmatpush2.msra.mxu0 0.0
    %105 = vmatprep.mubr.f32.mxu0 0.0
    %106 = vmatmul.mubr.f32.gmra.mxu0 %v39
    %v107 = vpop.f32.mrf.mxu0
    %v108 = vadd.f32 0.0, %v107
    %v109 = vpop.f32.mrf.mxu0
    %110 = vdwg.mxu0
    %v111 = vlaneseq
    %v112 = vshrl.u32 %v111, 7
    %v113 = vsub.s32 0, %v112
    %v114 = vrot.slane %v29, %v113
    %v115 = vadd.f32 %v108, %v114
    %vm116 = vcmask 64512
    %v117 = vsel %vm116, %v115, -inf
    %118 = vmax.xlane.f32.xlu0 %v117
    %v119 = vpop.xlane.xlu0 %118
    %v120 = vsub.f32 %v115, %v119
    %v121 = vmul.f32 %v120, 1.442695
    %v122 = vpow.pop %v121
    %v123 = vsel %vm116, %v122, 0.0
    %124 = vadd.xlane.f32.xlu0 %v123
    %v125 = vpop.xlane.xlu0 %124
    %v126 = vrcp.pop %v125
    %v127 = vmul.f32 %v122, %v126
    %v128 = vld [vmem:[%s1] sm:$0x1]
    %v129 = vld [vmem:[%s1 + $0x8] sm:$0x1]
    %v130 = vld [vmem:[%s1 + $0x10] sm:$0x1]
    %v131 = vld [vmem:[%s1 + $0x18] sm:$0x1]
    %v132 = vld [vmem:[%s1 + $0x20] sm:$0x1]
    %v133 = vld [vmem:[%s1 + $0x28] sm:$0x1]
    %v134 = vld [vmem:[%s1 + $0x30] sm:$0x1]
    %v135 = vld [vmem:[%s1 + $0x38] sm:$0x1]
    %137 = vset.pattern.permute.xlu0 0
    %138 = vperm.xlu0 %137, %v127
    %v139 = vpop.permute.xlu0 %138
    %v149 = vrot.slane %v129, 7
    %vm150 = vcmask 1041409
    %v151 = vsel %vm150, %v149, %v128
    %v152 = vrot.slane %v130, 6
    %vm153 = vcmask 1042434
    %v154 = vsel %vm153, %v152, %v151
    %v155 = vrot.slane %v131, 5
    %vm156 = vcmask 1043459
    %v157 = vsel %vm156, %v155, %v154
    %v158 = vrot.slane %v132, 4
    %vm159 = vcmask 1044484
    %v160 = vsel %vm159, %v158, %v157
    %v161 = vrot.slane %v133, 3
    %vm162 = vcmask 1045509
    %v163 = vsel %vm162, %v161, %v160
    %v164 = vrot.slane %v134, 2
    %vm165 = vcmask 1046534
    %v166 = vsel %vm165, %v164, %v163
    %v167 = vrot.slane %v135, 1
    %vm168 = vcmask 1047559
    %v169 = vsel %vm168, %v167, %v166
    %v171 = vmul.f32 %v139, %v169
    %v172 = vld [vmem:[%s1 + $0x1] sm:$0x1]
    %v173 = vld [vmem:[%s1 + $0x9] sm:$0x1]
    %v174 = vld [vmem:[%s1 + $0x11] sm:$0x1]
    %v175 = vld [vmem:[%s1 + $0x19] sm:$0x1]
    %v176 = vld [vmem:[%s1 + $0x21] sm:$0x1]
    %v177 = vld [vmem:[%s1 + $0x29] sm:$0x1]
    %v178 = vld [vmem:[%s1 + $0x31] sm:$0x1]
    %v179 = vld [vmem:[%s1 + $0x39] sm:$0x1]
    %180 = vset.pattern.permute.xlu0 1
    %181 = vperm.xlu0 %180, %v127
    %v182 = vpop.permute.xlu0 %181
    %v192 = vrot.slane %v173, 7
    %v193 = vsel %vm150, %v192, %v172
    %v194 = vrot.slane %v174, 6
    %v195 = vsel %vm153, %v194, %v193
    %v196 = vrot.slane %v175, 5
    %v197 = vsel %vm156, %v196, %v195
    %v198 = vrot.slane %v176, 4
    %v199 = vsel %vm159, %v198, %v197
    %v200 = vrot.slane %v177, 3
    %v201 = vsel %vm162, %v200, %v199
    %v202 = vrot.slane %v178, 2
    %v203 = vsel %vm165, %v202, %v201
    %v204 = vrot.slane %v179, 1
    %v205 = vsel %vm168, %v204, %v203
    %v207 = vmul.f32 %v182, %v205
    %v208 = vadd.f32 %v171, %v207
    %v209 = vld [vmem:[%s1 + $0x2] sm:$0x1]
    %v210 = vld [vmem:[%s1 + $0xa] sm:$0x1]
    %v211 = vld [vmem:[%s1 + $0x12] sm:$0x1]
    %v212 = vld [vmem:[%s1 + $0x1a] sm:$0x1]
    %v213 = vld [vmem:[%s1 + $0x22] sm:$0x1]
    %v214 = vld [vmem:[%s1 + $0x2a] sm:$0x1]
    %v215 = vld [vmem:[%s1 + $0x32] sm:$0x1]
    %v216 = vld [vmem:[%s1 + $0x3a] sm:$0x1]
    %217 = vset.pattern.permute.xlu0 2
    %218 = vperm.xlu0 %217, %v127
    %v219 = vpop.permute.xlu0 %218
    %v229 = vrot.slane %v210, 7
    %v230 = vsel %vm150, %v229, %v209
    %v231 = vrot.slane %v211, 6
    %v232 = vsel %vm153, %v231, %v230
    %v233 = vrot.slane %v212, 5
    %v234 = vsel %vm156, %v233, %v232
    %v235 = vrot.slane %v213, 4
    %v236 = vsel %vm159, %v235, %v234
    %v237 = vrot.slane %v214, 3
    %v238 = vsel %vm162, %v237, %v236
    %v239 = vrot.slane %v215, 2
    %v240 = vsel %vm165, %v239, %v238
    %v241 = vrot.slane %v216, 1
    %v242 = vsel %vm168, %v241, %v240
    %v244 = vmul.f32 %v219, %v242
    %v245 = vadd.f32 %v208, %v244
    %v246 = vld [vmem:[%s1 + $0x3] sm:$0x1]
    %v247 = vld [vmem:[%s1 + $0xb] sm:$0x1]
    %v248 = vld [vmem:[%s1 + $0x13] sm:$0x1]
    %v249 = vld [vmem:[%s1 + $0x1b] sm:$0x1]
    %v250 = vld [vmem:[%s1 + $0x23] sm:$0x1]
    %v251 = vld [vmem:[%s1 + $0x2b] sm:$0x1]
    %v252 = vld [vmem:[%s1 + $0x33] sm:$0x1]
    %v253 = vld [vmem:[%s1 + $0x3b] sm:$0x1]
    %254 = vset.pattern.permute.xlu0 3
    %255 = vperm.xlu0 %254, %v127
    %v256 = vpop.permute.xlu0 %255
    %v266 = vrot.slane %v247, 7
    %v267 = vsel %vm150, %v266, %v246
    %v268 = vrot.slane %v248, 6
    %v269 = vsel %vm153, %v268, %v267
    %v270 = vrot.slane %v249, 5
    %v271 = vsel %vm156, %v270, %v269
    %v272 = vrot.slane %v250, 4
    %v273 = vsel %vm159, %v272, %v271
    %v274 = vrot.slane %v251, 3
    %v275 = vsel %vm162, %v274, %v273
    %v276 = vrot.slane %v252, 2
    %v277 = vsel %vm165, %v276, %v275
    %v278 = vrot.slane %v253, 1
    %v279 = vsel %vm168, %v278, %v277
    %v281 = vmul.f32 %v256, %v279
    %v282 = vadd.f32 %v245, %v281
    %v283 = vld [vmem:[%s1 + $0x4] sm:$0x1]
    %v284 = vld [vmem:[%s1 + $0xc] sm:$0x1]
    %v285 = vld [vmem:[%s1 + $0x14] sm:$0x1]
    %v286 = vld [vmem:[%s1 + $0x1c] sm:$0x1]
    %v287 = vld [vmem:[%s1 + $0x24] sm:$0x1]
    %v288 = vld [vmem:[%s1 + $0x2c] sm:$0x1]
    %v289 = vld [vmem:[%s1 + $0x34] sm:$0x1]
    %v290 = vld [vmem:[%s1 + $0x3c] sm:$0x1]
    %291 = vset.pattern.permute.xlu0 4
    %292 = vperm.xlu0 %291, %v127
    %v293 = vpop.permute.xlu0 %292
    %v303 = vrot.slane %v284, 7
    %v304 = vsel %vm150, %v303, %v283
    %v305 = vrot.slane %v285, 6
    %v306 = vsel %vm153, %v305, %v304
    %v307 = vrot.slane %v286, 5
    %v308 = vsel %vm156, %v307, %v306
    %v309 = vrot.slane %v287, 4
    %v310 = vsel %vm159, %v309, %v308
    %v311 = vrot.slane %v288, 3
    %v312 = vsel %vm162, %v311, %v310
    %v313 = vrot.slane %v289, 2
    %v314 = vsel %vm165, %v313, %v312
    %v315 = vrot.slane %v290, 1
    %v316 = vsel %vm168, %v315, %v314
    %v318 = vmul.f32 %v293, %v316
    %v319 = vadd.f32 %v282, %v318
    %v320 = vld [vmem:[%s1 + $0x5] sm:$0x1]
    %v321 = vld [vmem:[%s1 + $0xd] sm:$0x1]
    %v322 = vld [vmem:[%s1 + $0x15] sm:$0x1]
    %v323 = vld [vmem:[%s1 + $0x1d] sm:$0x1]
    %v324 = vld [vmem:[%s1 + $0x25] sm:$0x1]
    %v325 = vld [vmem:[%s1 + $0x2d] sm:$0x1]
    %v326 = vld [vmem:[%s1 + $0x35] sm:$0x1]
    %v327 = vld [vmem:[%s1 + $0x3d] sm:$0x1]
    %328 = vset.pattern.permute.xlu0 5
    %329 = vperm.xlu0 %328, %v127
    %v330 = vpop.permute.xlu0 %329
    %v340 = vrot.slane %v321, 7
    %v341 = vsel %vm150, %v340, %v320
    %v342 = vrot.slane %v322, 6
    %v343 = vsel %vm153, %v342, %v341
    %v344 = vrot.slane %v323, 5
    %v345 = vsel %vm156, %v344, %v343
    %v346 = vrot.slane %v324, 4
    %v347 = vsel %vm159, %v346, %v345
    %v348 = vrot.slane %v325, 3
    %v349 = vsel %vm162, %v348, %v347
    %v350 = vrot.slane %v326, 2
    %v351 = vsel %vm165, %v350, %v349
    %v352 = vrot.slane %v327, 1
    %v353 = vsel %vm168, %v352, %v351
    %v355 = vmul.f32 %v330, %v353
    %v356 = vadd.f32 %v319, %v355
    %v357 = vld [vmem:[%s1 + $0x6] sm:$0x1]
    %v358 = vld [vmem:[%s1 + $0xe] sm:$0x1]
    %v359 = vld [vmem:[%s1 + $0x16] sm:$0x1]
    %v360 = vld [vmem:[%s1 + $0x1e] sm:$0x1]
    %v361 = vld [vmem:[%s1 + $0x26] sm:$0x1]
    %v362 = vld [vmem:[%s1 + $0x2e] sm:$0x1]
    %v363 = vld [vmem:[%s1 + $0x36] sm:$0x1]
    %v364 = vld [vmem:[%s1 + $0x3e] sm:$0x1]
    %365 = vset.pattern.permute.xlu0 6
    %366 = vperm.xlu0 %365, %v127
    %v367 = vpop.permute.xlu0 %366
    %v377 = vrot.slane %v358, 7
    %v378 = vsel %vm150, %v377, %v357
    %v379 = vrot.slane %v359, 6
    %v380 = vsel %vm153, %v379, %v378
    %v381 = vrot.slane %v360, 5
    %v382 = vsel %vm156, %v381, %v380
    %v383 = vrot.slane %v361, 4
    %v384 = vsel %vm159, %v383, %v382
    %v385 = vrot.slane %v362, 3
    %v386 = vsel %vm162, %v385, %v384
    %v387 = vrot.slane %v363, 2
    %v388 = vsel %vm165, %v387, %v386
    %v389 = vrot.slane %v364, 1
    %v390 = vsel %vm168, %v389, %v388
    %v392 = vmul.f32 %v367, %v390
    %v393 = vadd.f32 %v356, %v392
    %v394 = vld [vmem:[%s1 + $0x7] sm:$0x1]
    %v395 = vld [vmem:[%s1 + $0xf] sm:$0x1]
    %v396 = vld [vmem:[%s1 + $0x17] sm:$0x1]
    %v397 = vld [vmem:[%s1 + $0x1f] sm:$0x1]
    %v398 = vld [vmem:[%s1 + $0x27] sm:$0x1]
    %v399 = vld [vmem:[%s1 + $0x2f] sm:$0x1]
    %v400 = vld [vmem:[%s1 + $0x37] sm:$0x1]
    %v401 = vld [vmem:[%s1 + $0x3f] sm:$0x1]
    %402 = vset.pattern.permute.xlu0 7
    %403 = vperm.xlu0 %402, %v127
    %v404 = vpop.permute.xlu0 %403
    %v414 = vrot.slane %v395, 7
    %v415 = vsel %vm150, %v414, %v394
    %v416 = vrot.slane %v396, 6
    %v417 = vsel %vm153, %v416, %v415
    %v418 = vrot.slane %v397, 5
    %v419 = vsel %vm156, %v418, %v417
    %v420 = vrot.slane %v398, 4
    %v421 = vsel %vm159, %v420, %v419
    %v422 = vrot.slane %v399, 3
    %v423 = vsel %vm162, %v422, %v421
    %v424 = vrot.slane %v400, 2
    %v425 = vsel %vm165, %v424, %v423
    %v426 = vrot.slane %v401, 1
    %v427 = vsel %vm168, %v426, %v425
    %v429 = vmul.f32 %v404, %v427
    %v430 = vadd.f32 %v393, %v429
    %v431 = vld [vmem:[#allocation2 + $0x70] sm:$0xff]
    %v432 = vld [vmem:[#allocation2 + $0x78] sm:$0xff]
    %v433 = vld [vmem:[#allocation2 + $0x80] sm:$0xff]
    %v434 = vld [vmem:[#allocation2 + $0x88] sm:$0xff]
    %vm435 = vcmask 261120
    %v437 = vsel %vm435, %v430, 0
    %439 = vmatprep.subr.mxu0 0.0
    %440 = vmatpush1.msra.mxu0 0.0
    %441 = vmatprep.subr.mxu0 0.0
    %442 = vmatpush1.msra.mxu0 0.0
    %443 = vmatprep.subr.mxu0 0.0
    %444 = vmatpush1.msra.mxu0 0.0
    %445 = vmatprep.subr.mxu0 0.0
    %446 = vmatpush1.msra.mxu0 0.0
    %447 = vmatprep.subr.mxu0 0.0
    %448 = vmatpush1.msra.mxu0 0.0
    %449 = vmatprep.subr.mxu0 0.0
    %450 = vmatpush1.msra.mxu0 0.0
    %451 = vmatprep.subr.mxu0 0.0
    %452 = vmatpush1.msra.mxu0 0.0
    %453 = vmatprep.subr.mxu0 0.0
    %454 = vmatpush1.msra.mxu0 0.0
    %455 = vmatprep.subr.mxu0 0.0
    %456 = vmatpush1.msra.mxu0 0.0
    %457 = vmatprep.subr.mxu0 0.0
    %458 = vmatpush1.msra.mxu0 0.0
    %459 = vmatprep.subr.mxu0 0.0
    %460 = vmatpush1.msra.mxu0 0.0
    %461 = vmatprep.subr.mxu0 0.0
    %462 = vmatpush1.msra.mxu0 0.0
    %463 = vmatprep.subr.mxu0 0.0
    %464 = vmatpush1.msra.mxu0 %v434
    %465 = vmatprep.subr.mxu0 0.0
    %466 = vmatpush1.msra.mxu0 %v433
    %467 = vmatprep.subr.mxu0 0.0
    %468 = vmatpush1.msra.mxu0 %v432
    %469 = vmatprep.subr.mxu0 0.0
    %470 = vmatpush1.msra.mxu0 %v431
    %471 = vmatprep.subr.mxu0 0.0
    %472 = vmatpush2.msra.mxu0 0.0
    %473 = vmatprep.subr.mxu0 0.0
    %474 = vmatpush2.msra.mxu0 0.0
    %475 = vmatprep.subr.mxu0 0.0
    %476 = vmatpush2.msra.mxu0 0.0
    %477 = vmatprep.subr.mxu0 0.0
    %478 = vmatpush2.msra.mxu0 0.0
    %479 = vmatprep.subr.mxu0 0.0
    %480 = vmatpush2.msra.mxu0 0.0
    %481 = vmatprep.subr.mxu0 0.0
    %482 = vmatpush2.msra.mxu0 0.0
    %483 = vmatprep.subr.mxu0 0.0
    %484 = vmatpush2.msra.mxu0 0.0
    %485 = vmatprep.subr.mxu0 0.0
    %486 = vmatpush2.msra.mxu0 0.0
    %487 = vmatprep.subr.mxu0 0.0
    %488 = vmatpush2.msra.mxu0 0.0
    %489 = vmatprep.subr.mxu0 0.0
    %490 = vmatpush2.msra.mxu0 0.0
    %491 = vmatprep.subr.mxu0 0.0
    %492 = vmatpush2.msra.mxu0 0.0
    %493 = vmatprep.subr.mxu0 0.0
    %494 = vmatpush2.msra.mxu0 0.0
    %495 = vmatprep.subr.mxu0 0.0
    %496 = vmatpush2.msra.mxu0 0.0
    %497 = vmatprep.subr.mxu0 0.0
    %498 = vmatpush2.msra.mxu0 0.0
    %499 = vmatprep.subr.mxu0 0.0
    %500 = vmatpush2.msra.mxu0 0.0
    %501 = vmatprep.subr.mxu0 0.0
    %502 = vmatpush2.msra.mxu0 0.0
    %503 = vmatprep.mubr.f32.mxu0 0.0
    %504 = vmatmul.mubr.f32.gmra.mxu0 %v437
    %v505 = vpop.f32.mrf.mxu0
    %v506 = vadd.f32 0.0, %v505
    %v507 = vpop.f32.mrf.mxu0
    %508 = vdwg.mxu0
    %510 = vrot.lane.b32.xlu0 %v506, 8
    %v511 = vpop.permute.xlu0 %510
    %v513 = vadd.f32 %v108, %v511
    %v514 = vadd.f32 %v513, %v114
    %v515 = vmax.f32 %v514, 0.0
    %517 = vrot.lane.b32.xlu0 %v515, 120
    %v518 = vpop.permute.xlu0 %517
    %520 = vrot.lane.b32.xlu0 %v28, 112
    %v521 = vpop.permute.xlu0 %520
    %v523 = vsel %vm435, %v518, %v521
    %v524 = vld [vmem:[#allocation2] sm:$0xff]
    %v525 = vld [vmem:[#allocation2 + $0x8] sm:$0xff]
    %v526 = vld [vmem:[#allocation2 + $0x10] sm:$0xff]
    %v527 = vld [vmem:[#allocation2 + $0x18] sm:$0xff]
    %v528 = vld [vmem:[#allocation2 + $0x20] sm:$0xff]
    %v529 = vld [vmem:[#allocation2 + $0x28] sm:$0xff]
    %v530 = vld [vmem:[#allocation2 + $0x30] sm:$0xff]
    %v531 = vld [vmem:[#allocation2 + $0x38] sm:$0xff]
    %v532 = vlaneseq
    %v533 = vshrl.u32 %v532, 7
    %v534 = vsub.s32 0, %v533
    %v535 = vrot.slane %v30, %v534
    %vm536 = vcmask 523264
    %v538 = vsel %vm536, %v523, 0
    %540 = vmatprep.subr.mxu0 0.0
    %541 = vmatpush1.msra.mxu0 0.0
    %542 = vmatprep.subr.mxu0 0.0
    %543 = vmatpush1.msra.mxu0 0.0
    %544 = vmatprep.subr.mxu0 0.0
    %545 = vmatpush1.msra.mxu0 0.0
    %546 = vmatprep.subr.mxu0 0.0
    %547 = vmatpush1.msra.mxu0 0.0
    %548 = vmatprep.subr.mxu0 0.0
    %549 = vmatpush1.msra.mxu0 0.0
    %550 = vmatprep.subr.mxu0 0.0
    %551 = vmatpush1.msra.mxu0 0.0
    %552 = vmatprep.subr.mxu0 0.0
    %553 = vmatpush1.msra.mxu0 0.0
    %554 = vmatprep.subr.mxu0 0.0
    %555 = vmatpush1.msra.mxu0 0.0
    %556 = vmatprep.subr.mxu0 0.0
    %557 = vmatpush1.msra.mxu0 %v531
    %558 = vmatprep.subr.mxu0 0.0
    %559 = vmatpush1.msra.mxu0 %v530
    %560 = vmatprep.subr.mxu0 0.0
    %561 = vmatpush1.msra.mxu0 %v529
    %562 = vmatprep.subr.mxu0 0.0
    %563 = vmatpush1.msra.mxu0 %v528
    %564 = vmatprep.subr.mxu0 0.0
    %565 = vmatpush1.msra.mxu0 %v527
    %566 = vmatprep.subr.mxu0 0.0
    %567 = vmatpush1.msra.mxu0 %v526
    %568 = vmatprep.subr.mxu0 0.0
    %569 = vmatpush1.msra.mxu0 %v525
    %570 = vmatprep.subr.mxu0 0.0
    %571 = vmatpush1.msra.mxu0 %v524
    %572 = vmatprep.subr.mxu0 0.0
    %573 = vmatpush2.msra.mxu0 0.0
    %574 = vmatprep.subr.mxu0 0.0
    %575 = vmatpush2.msra.mxu0 0.0
    %576 = vmatprep.subr.mxu0 0.0
    %577 = vmatpush2.msra.mxu0 0.0
    %578 = vmatprep.subr.mxu0 0.0
    %579 = vmatpush2.msra.mxu0 0.0
    %580 = vmatprep.subr.mxu0 0.0
    %581 = vmatpush2.msra.mxu0 0.0
    %582 = vmatprep.subr.mxu0 0.0
    %583 = vmatpush2.msra.mxu0 0.0
    %584 = vmatprep.subr.mxu0 0.0
    %585 = vmatpush2.msra.mxu0 0.0
    %586 = vmatprep.subr.mxu0 0.0
    %587 = vmatpush2.msra.mxu0 0.0
    %588 = vmatprep.subr.mxu0 0.0
    %589 = vmatpush2.msra.mxu0 0.0
    %590 = vmatprep.subr.mxu0 0.0
    %591 = vmatpush2.msra.mxu0 0.0
    %592 = vmatprep.subr.mxu0 0.0
    %593 = vmatpush2.msra.mxu0 0.0
    %594 = vmatprep.subr.mxu0 0.0
    %595 = vmatpush2.msra.mxu0 0.0
    %596 = vmatprep.subr.mxu0 0.0
    %597 = vmatpush2.msra.mxu0 0.0
    %598 = vmatprep.subr.mxu0 0.0
    %599 = vmatpush2.msra.mxu0 0.0
    %600 = vmatprep.subr.mxu0 0.0
    %601 = vmatpush2.msra.mxu0 0.0
    %602 = vmatprep.subr.mxu0 0.0
    %603 = vmatpush2.msra.mxu0 0.0
    %604 = vmatprep.mubr.f32.mxu0 0.0
    %605 = vmatmul.mubr.f32.gmra.mxu0 %v538
    %v606 = vpop.f32.mrf.mxu0
    %v607 = vadd.f32 %v535, %v606
    %v608 = vpop.f32.mrf.mxu0
    %609 = vdwg.mxu0
    %v610 = vxor.u32 %v607, 2147483648
    %v611 = vmul.f32 %v610, 1.442695
    %v612 = vpow.pop %v611
    %v613 = vadd.f32 %v612, 1.0
    %v614 = vrcp.pop %v613
    %v615 = vmul.f32 1.0, %v614
    %v616 = vtanh.pop %v607
    %617 = vrot.lane.b32.xlu0 %v28, 80
    %v618 = vpop.permute.xlu0 %617
    %v620 = vmul.f32 %v615, %v618
    %622 = vrot.lane.b32.xlu0 %v616, 64
    %v623 = vpop.permute.xlu0 %622
    %v625 = vmul.f32 %v615, %v623
    %627 = vrot.lane.b32.xlu0 %v625, 32
    %v628 = vpop.permute.xlu0 %627
    %v630 = vadd.f32 %v620, %v628
    %v631 = vtanh.pop %v630
    %633 = vrot.lane.b32.xlu0 %v631, 64
    %v634 = vpop.permute.xlu0 %633
    %v636 = vmul.f32 %v615, %v634
    %638 = vrot.lane.b32.xlu0 %v636, 32
    %v639 = vpop.permute.xlu0 %638
    %644 = vrot.lane.b32.xlu0 %v431, 96
    %v645 = vpop.permute.xlu0 %644
    %646 = vrot.lane.b32.xlu0 %v432, 96
    %v647 = vpop.permute.xlu0 %646
    %648 = vrot.lane.b32.xlu0 %v433, 96
    %v649 = vpop.permute.xlu0 %648
    %650 = vrot.lane.b32.xlu0 %v434, 96
    %v651 = vpop.permute.xlu0 %650
    %657 = vrot.lane.b32.xlu0 %v114, 88
    %v658 = vpop.permute.xlu0 %657
    %v660 = vsel %vm435, %v639, 0
    %662 = vmatprep.subr.mxu0 0.0
    %663 = vmatpush1.msra.mxu0 0.0
    %664 = vmatprep.subr.mxu0 0.0
    %665 = vmatpush1.msra.mxu0 0.0
    %666 = vmatprep.subr.mxu0 0.0
    %667 = vmatpush1.msra.mxu0 0.0
    %668 = vmatprep.subr.mxu0 0.0
    %669 = vmatpush1.msra.mxu0 0.0
    %670 = vmatprep.subr.mxu0 0.0
    %671 = vmatpush1.msra.mxu0 0.0
    %672 = vmatprep.subr.mxu0 0.0
    %673 = vmatpush1.msra.mxu0 0.0
    %674 = vmatprep.subr.mxu0 0.0
    %675 = vmatpush1.msra.mxu0 0.0
    %676 = vmatprep.subr.mxu0 0.0
    %677 = vmatpush1.msra.mxu0 0.0
    %678 = vmatprep.subr.mxu0 0.0
    %679 = vmatpush1.msra.mxu0 0.0
    %680 = vmatprep.subr.mxu0 0.0
    %681 = vmatpush1.msra.mxu0 0.0
    %682 = vmatprep.subr.mxu0 0.0
    %683 = vmatpush1.msra.mxu0 0.0
    %684 = vmatprep.subr.mxu0 0.0
    %685 = vmatpush1.msra.mxu0 0.0
    %686 = vmatprep.subr.mxu0 0.0
    %687 = vmatpush1.msra.mxu0 %v651
    %688 = vmatprep.subr.mxu0 0.0
    %689 = vmatpush1.msra.mxu0 %v649
    %690 = vmatprep.subr.mxu0 0.0
    %691 = vmatpush1.msra.mxu0 %v647
    %692 = vmatprep.subr.mxu0 0.0
    %693 = vmatpush1.msra.mxu0 %v645
    %694 = vmatprep.subr.mxu0 0.0
    %695 = vmatpush2.msra.mxu0 0.0
    %696 = vmatprep.subr.mxu0 0.0
    %697 = vmatpush2.msra.mxu0 0.0
    %698 = vmatprep.subr.mxu0 0.0
    %699 = vmatpush2.msra.mxu0 0.0
    %700 = vmatprep.subr.mxu0 0.0
    %701 = vmatpush2.msra.mxu0 0.0
    %702 = vmatprep.subr.mxu0 0.0
    %703 = vmatpush2.msra.mxu0 0.0
    %704 = vmatprep.subr.mxu0 0.0
    %705 = vmatpush2.msra.mxu0 0.0
    %706 = vmatprep.subr.mxu0 0.0
    %707 = vmatpush2.msra.mxu0 0.0
    %708 = vmatprep.subr.mxu0 0.0
    %709 = vmatpush2.msra.mxu0 0.0
    %710 = vmatprep.subr.mxu0 0.0
    %711 = vmatpush2.msra.mxu0 0.0
    %712 = vmatprep.subr.mxu0 0.0
    %713 = vmatpush2.msra.mxu0 0.0
    %714 = vmatprep.subr.mxu0 0.0
    %715 = vmatpush2.msra.mxu0 0.0
    %716 = vmatprep.subr.mxu0 0.0
    %717 = vmatpush2.msra.mxu0 0.0
    %718 = vmatprep.subr.mxu0 0.0
    %719 = vmatpush2.msra.mxu0 0.0
    %720 = vmatprep.subr.mxu0 0.0
    %721 = vmatpush2.msra.mxu0 0.0
    %722 = vmatprep.subr.mxu0 0.0
    %723 = vmatpush2.msra.mxu0 0.0
    %724 = vmatprep.subr.mxu0 0.0
    %725 = vmatpush2.msra.mxu0 0.0
    %726 = vmatprep.mubr.f32.mxu0 0.0
    %727 = vmatmul.mubr.f32.gmra.mxu0 %v660
    %v728 = vpop.f32.mrf.mxu0
    %v729 = vadd.f32 %v658, %v728
    %v730 = vpop.f32.mrf.mxu0
    %731 = vdwg.mxu0
    %732 = vrot.lane.b32.xlu0 %v636, 48
    %v733 = vpop.permute.xlu0 %732
    %736 = vrot.lane.b32.xlu0 %v630, 16
    %v737 = vpop.permute.xlu0 %736
    %vm739 = vcmask 130048
    %v740 = vsel %vm739, %v729, %v733
    %v741 = vsel %vm37, %v740, %v737
    %vm742 = vcmask 654336
    %v743 = vsel %vm742, %v741, 0.0
    %744 = vst [vmem:[%s3] sm:$0xff] %v743
    // Predicated region
    $region18: #{attention_decoder.1} parent=1 // pred_check
      _
    $region19: #{attention_decoder.1} parent=1 // pred_check_branch
      %746 = sbr.rel (0) target = $region21
    $region20: #{attention_decoder.1} parent=1 // pred_region
      _
    $region21: #{attention_decoder.1} parent=1 // pred_fallthru
      _
    // Predicated region
    $region22: #{attention_decoder.1} parent=1 // pred_check
      _
    $region23: #{attention_decoder.1} parent=1 // pred_check_branch
      %748 = sbr.rel (0) target = $region25
    $region24: #{attention_decoder.1} parent=1 // pred_region
      _
    $region25: #{attention_decoder.1} parent=1 // pred_fallthru
      _
    %749 = vsyncpa [#allocation3], 1

</llo_original>
